<compile_context>
chip_gen: v6e
topology: v6e:2x2x1
jax: 0.10.0
libtpu: 0.0.40
codegen_flags: <defaults>
</compile_context>

<pallas_src>
import jax
import jax.numpy as jnp
from jax import lax
from jax.experimental import pallas as pl
from jax.experimental.pallas import tpu as pltpu


def _device_config():
    """Return (num_tensorcores, default_block_bytes_per_input, vmem_cap_bytes)."""
    kind = ""
    try:
        kind = jax.devices()[0].device_kind.lower()
    except Exception:
        pass
    if "v7" in kind:
        # 2 TCs / chip, 64 MiB VMEM per core: medium blocks, capped vmem limit.
        return 2, 6 << 20, 48 << 20
    if "v6" in kind:
        # Single TC, 128 MiB VMEM: larger blocks amortize the ~0.35us/step cost.
        return 1, 12 << 20, 96 << 20
    # v5e / unknown: bandwidth-bound already at ~2-4 MiB blocks; be conservative.
    return 1, 3 << 20, 48 << 20


def _make_kernel(TN, HW, STRIP, red_axis):
    strips = TN // STRIP

    def kernel(pred_ref, y_ref, sum_pred_ref, sum_y_ref):
        k = pl.program_id(red_axis)

        @pl.when(k == 0)
        def _():
            sum_pred_ref[...] = jnp.zeros_like(sum_pred_ref)
            sum_y_ref[...] = jnp.zeros_like(sum_y_ref)

        if strips == 1:
            acc_p = pred_ref[...].astype(jnp.float32)
            acc_y = y_ref[...].astype(jnp.float32)
        else:
            # Strip loop keeps the live f32 temporary at (STRIP, HW) instead of
            # materializing a (TN, HW) f32 block.
            def body(r, carry):
                ap, ay = carry
                off = pl.multiple_of(r * STRIP, STRIP)
                ap = ap + pred_ref[pl.ds(off, STRIP), :].astype(jnp.float32)
                ay = ay + y_ref[pl.ds(off, STRIP), :].astype(jnp.float32)
                return ap, ay

            zeros = jnp.zeros((STRIP, HW), jnp.float32)
            acc_p, acc_y = lax.fori_loop(0, strips, body, (zeros, zeros),
                                         unroll=strips <= 8)

        sum_pred_ref[...] += acc_p
        sum_y_ref[...] += acc_y

    return kernel


def nrmse_s_climatebench(pred, y, deg2rad=True, target_block_bytes=None):
    """Pallas implementation of NRMSELoss_s_ClimateBench.forward.

    pred, y: [B, T, H, W] arrays (f32 or bf16).  Returns a float32 scalar.
    """
    assert pred.shape == y.shape and pred.ndim == 4
    B, T, H, W = y.shape
    N = B * T
    HW = H * W

    NC, default_block_bytes, vmem_cap = _device_config()
    if target_block_bytes is None:
        target_block_bytes = default_block_bytes

    itemsize = jnp.dtype(pred.dtype).itemsize
    # Sublane tile (rows) of the input dtype: 8 f32, 16 bf16, 32 int8/fp8.
    STRIP = 8 * max(1, 4 // itemsize)

    # Lane-dense layout: last dim is the full flattened field.
    pred_f = pred.reshape(N, HW)
    y_f = y.reshape(N, HW)

    # ---- block sizing ----------------------------------------------------
    bytes_per_row = max(1, HW * itemsize)
    tn_cap = max(STRIP, (target_block_bytes // bytes_per_row) // STRIP * STRIP)
    tn_cap = min(tn_cap, 2048)  # bound strip-loop trip count / trace size
    rows_per_core = -(-N // NC)
    # Round DOWN to the sublane tile so at least one full block exists whenever
    # N >= STRIP; the ragged tail is handled in plain JAX (no pad, no copies).
    TN = min(tn_cap, max(STRIP, (rows_per_core // STRIP) * STRIP))

    full_blocks = N // TN
    if full_blocks == 0:
        # Too small for even one full block: trivial plain-JAX sums.
        sum_pred = pred_f.astype(jnp.float32).sum(axis=0)
        sum_y = y_f.astype(jnp.float32).sum(axis=0)
    else:
        NC_eff = max(1, min(NC, full_blocks))
        KB = full_blocks // NC_eff
        N_kernel = NC_eff * KB * TN  # rows covered by the Pallas kernel

        # VMEM budget: 2 inputs x 2 pipeline buffers x block + accumulators + slack.
        block_in_bytes = TN * HW * itemsize
        acc_bytes = STRIP * HW * 4
        vmem_limit = int(min(vmem_cap,
                             max(16 << 20,
                                 4 * block_in_bytes + 6 * acc_bytes + (4 << 20))))

        if NC_eff > 1:
            grid = (NC_eff, KB)
            in_map = lambda c, k: (c * KB + k, 0)
            out_map = lambda c, k: (c, 0, 0)
            red_axis = 1
            # Genuinely core-shard axis 0 on multi-TC parts (v7x); fall back to
            # "parallel" if CORE_PARALLEL is unavailable in this jax version.
            core_sem = getattr(pltpu, "CORE_PARALLEL", "parallel")
            dims = (core_sem, pltpu.ARBITRARY)
        else:
            grid = (KB,)
            in_map = lambda k: (k, 0)
            out_map = lambda k: (0, 0, 0)
            red_axis = 0
            dims = (pltpu.ARBITRARY,)

        # The full (N, HW) arrays are passed in; the grid only visits full
        # blocks, so the ragged edge is never read (Pallas does not zero it).
        sum_pred_p, sum_y_p = pl.pallas_call(
            _make_kernel(TN, HW, STRIP, red_axis),
            out_shape=(
                jax.ShapeDtypeStruct((NC_eff, STRIP, HW), jnp.float32),
                jax.ShapeDtypeStruct((NC_eff, STRIP, HW), jnp.float32),
            ),
            grid_spec=pltpu.PrefetchScalarGridSpec(
                num_scalar_prefetch=0,
                grid=grid,
                in_specs=[
                    pl.BlockSpec((TN, HW), in_map),   # pred
                    pl.BlockSpec((TN, HW), in_map),   # y
                ],
                out_specs=[
                    pl.BlockSpec((None, STRIP, HW), out_map),  # sum_pred
                    pl.BlockSpec((None, STRIP, HW), out_map),  # sum_y
                ],
            ),
            compiler_params=pltpu.CompilerParams(
                dimension_semantics=dims,
                vmem_limit_bytes=vmem_limit,
            ),
        )(pred_f, y_f)

        sum_pred = jnp.sum(sum_pred_p, axis=(0, 1))   # (HW,)
        sum_y = jnp.sum(sum_y_p, axis=(0, 1))         # (HW,)

        if N_kernel < N:
            # Ragged tail (< NC*TN rows): tiny plain-JAX sum, no padded copies.
            sum_pred = sum_pred + pred_f[N_kernel:].astype(jnp.float32).sum(axis=0)
            sum_y = sum_y + y_f[N_kernel:].astype(jnp.float32).sum(axis=0)

    # ---- O(H*W) epilogue in plain JAX -------------------------------------
    lats = jnp.linspace(-90.0, 90.0, W, dtype=jnp.float32)
    weights_w = jnp.cos(jnp.pi * lats / 180.0) if deg2rad else jnp.cos(lats)
    # Weights broadcast along the LAST axis (length W), exactly as the PyTorch
    # module does; flattened position h*W + w therefore carries weights_w[w].
    w_flat = jnp.tile(weights_w, H)                    # (HW,)

    n_f = jnp.float32(N)
    hw_f = jnp.float32(HW)
    mean_diff = (sum_pred - sum_y) / n_f
    num = jnp.sqrt(jnp.sum(mean_diff * mean_diff * w_flat) / hw_f)
    denom = jnp.sum(sum_y * w_flat) / (n_f * hw_f)
    return num / denom


def _reference(pred, y, deg2rad=True):
    """Pure-JAX reference mirroring the PyTorch module."""
    W = y.shape[-1]
    lats = jnp.linspace(-90.0, 90.0, W, dtype=jnp.float32)
    weights = jnp.cos(jnp.pi * lats / 180.0) if deg2rad else jnp.cos(lats)

    def wgm(x):
        return jnp.mean(x * weights, axis=(-1, -2))

    diff = pred.mean(axis=(0, 1)) - y.mean(axis=(0, 1))
    return jnp.sqrt(wgm(diff ** 2)) / wgm(y).mean(axis=(0, 1))


if __name__ == "__main__":
    key = jax.random.PRNGKey(0)
    k1, k2 = jax.random.split(key)

    # (1) ragged N: exercises the strip loop and the plain-JAX tail path.
    B, T, H, W = 2, 9, 16, 16
    pred = jax.random.normal(k1, (B, T, H, W), dtype=jnp.float32)
    y = jax.random.normal(k2, (B, T, H, W), dtype=jnp.float32) + 2.0  # denom away from 0

    out = jax.block_until_ready(nrmse_s_climatebench(pred, y))
    ref = jax.block_until_ready(_reference(pred, y))
    assert jnp.allclose(out, ref, rtol=1e-5, atol=1e-6), (out, ref)

    # (2) tiny blocks -> multi-step reduction grid (k==0 init / k>0 accumulate).
    out2 = jax.block_until_ready(
        nrmse_s_climatebench(pred, y, target_block_bytes=8 * 1024))
    assert jnp.allclose(out2, ref, rtol=1e-5, atol=1e-6), (out2, ref)

    # (3) exactly block-divisible N (no tail).
    pred3, y3 = pred[:, :4], y[:, :4]
    out3 = jax.block_until_ready(nrmse_s_climatebench(pred3, y3))
    ref3 = jax.block_until_ready(_reference(pred3, y3))
    assert jnp.allclose(out3, ref3, rtol=1e-5, atol=1e-6), (out3, ref3)

    print("KERNEL_OK")
</pallas_src>

<mosaic_0001>
module attributes {stable_mosaic.version = 11 : i64} {
  func.func @kernel(%arg0: i32, %arg1: memref<16x256xf32, #tpu.memory_space<vmem>>, %arg2: memref<16x256xf32, #tpu.memory_space<vmem>>, %arg3: memref<1x8x256xf32, #tpu.memory_space<vmem>>, %arg4: memref<1x8x256xf32, #tpu.memory_space<vmem>>) attributes {dimension_semantics = [#tpu.dimension_semantics<arbitrary>], iteration_bounds = array<i64: 1>, scalar_prefetch = 0 : i64, scratch_operands = 0 : i64, tpu.core_type = #tpu.core_type<tc>, window_params = [{transform_indices = @transform_0, window_bounds = array<i64: 16, 256>}, {transform_indices = @transform_1, window_bounds = array<i64: 16, 256>}, {pipeline_mode = #tpu.pipeline_mode<synchronous>, transform_indices = @transform_2, window_bounds = array<i64: 1, 8, 256>}, {pipeline_mode = #tpu.pipeline_mode<synchronous>, transform_indices = @transform_3, window_bounds = array<i64: 1, 8, 256>}]} {
    %c0_i32 = arith.constant 0 : i32
    %0 = arith.cmpi eq, %arg0, %c0_i32 : i32
    %1 = arith.extui %0 : i1 to i32
    %c0_i32_0 = arith.constant 0 : i32
    %2 = arith.cmpi ne, %1, %c0_i32_0 : i32
    scf.if %2 {
      %cst_18 = arith.constant 0.000000e+00 : f32
      %32 = vector.broadcast %cst_18 : f32 to vector<8x256xf32>
      %c0_19 = arith.constant 0 : index
      %c0_20 = arith.constant 0 : index
      %c0_21 = arith.constant 0 : index
      %33 = vector.load %arg3[%c0_19, %c0_20, %c0_21] : memref<1x8x256xf32, #tpu.memory_space<vmem>>, vector<1x8x256xf32>
      %34 = vector.shape_cast %33 : vector<1x8x256xf32> to vector<8x256xf32>
      %35 = vector.shape_cast %32 : vector<8x256xf32> to vector<1x8x256xf32>
      tpu.vector_store %arg3[%c0_19, %c0_20, %c0_21], %35 {strides = array<i32>} : memref<1x8x256xf32, #tpu.memory_space<vmem>>, vector<1x8x256xf32>,
      %cst_22 = arith.constant 0.000000e+00 : f32
      %36 = vector.broadcast %cst_22 : f32 to vector<8x256xf32>
      %c0_23 = arith.constant 0 : index
      %c0_24 = arith.constant 0 : index
      %c0_25 = arith.constant 0 : index
      %37 = vector.load %arg4[%c0_23, %c0_24, %c0_25] : memref<1x8x256xf32, #tpu.memory_space<vmem>>, vector<1x8x256xf32>
      %38 = vector.shape_cast %37 : vector<1x8x256xf32> to vector<8x256xf32>
      %39 = vector.shape_cast %36 : vector<8x256xf32> to vector<1x8x256xf32>
      tpu.vector_store %arg4[%c0_23, %c0_24, %c0_25], %39 {strides = array<i32>} : memref<1x8x256xf32, #tpu.memory_space<vmem>>, vector<1x8x256xf32>,
    } else {
    }
    %cst = arith.constant 0.000000e+00 : f32
    %3 = vector.broadcast %cst : f32 to vector<8x256xf32>
    %c0_i32_1 = arith.constant 0 : i32
    %c8_i32 = arith.constant 8 : i32
    %4 = arith.muli %c0_i32_1, %c8_i32 : i32
    %5 = tpu.assume_multiple %4, 8 : i32
    %6 = arith.index_cast %5 : i32 to index
    %c0 = arith.constant 0 : index
    %7 = vector.load %arg1[%6, %c0] : memref<16x256xf32, #tpu.memory_space<vmem>>, vector<8x256xf32>
    %8 = arith.addf %3, %7 : vector<8x256xf32>
    %9 = arith.index_cast %5 : i32 to index
    %c0_2 = arith.constant 0 : index
    %10 = vector.load %arg2[%9, %c0_2] : memref<16x256xf32, #tpu.memory_space<vmem>>, vector<8x256xf32>
    %11 = arith.addf %3, %10 : vector<8x256xf32>
    %c1_i32 = arith.constant 1 : i32
    %c8_i32_3 = arith.constant 8 : i32
    %12 = arith.muli %c1_i32, %c8_i32_3 : i32
    %13 = tpu.assume_multiple %12, 8 : i32
    %14 = arith.index_cast %13 : i32 to index
    %c0_4 = arith.constant 0 : index
    %15 = vector.load %arg1[%14, %c0_4] : memref<16x256xf32, #tpu.memory_space<vmem>>, vector<8x256xf32>
    %16 = arith.addf %8, %15 : vector<8x256xf32>
    %17 = arith.index_cast %13 : i32 to index
    %c0_5 = arith.constant 0 : index
    %18 = vector.load %arg2[%17, %c0_5] : memref<16x256xf32, #tpu.memory_space<vmem>>, vector<8x256xf32>
    %19 = arith.addf %11, %18 : vector<8x256xf32>
    %c2_i32 = arith.constant 2 : i32
    %c0_6 = arith.constant 0 : index
    %c0_7 = arith.constant 0 : index
    %c0_8 = arith.constant 0 : index
    %20 = vector.load %arg3[%c0_6, %c0_7, %c0_8] : memref<1x8x256xf32, #tpu.memory_space<vmem>>, vector<1x8x256xf32>
    %21 = vector.shape_cast %20 : vector<1x8x256xf32> to vector<8x256xf32>
    %22 = arith.addf %21, %16 : vector<8x256xf32>
    %c0_9 = arith.constant 0 : index
    %c0_10 = arith.constant 0 : index
    %c0_11 = arith.constant 0 : index
    %23 = vector.load %arg3[%c0_9, %c0_10, %c0_11] : memref<1x8x256xf32, #tpu.memory_space<vmem>>, vector<1x8x256xf32>
    %24 = vector.shape_cast %23 : vector<1x8x256xf32> to vector<8x256xf32>
    %25 = vector.shape_cast %22 : vector<8x256xf32> to vector<1x8x256xf32>
    tpu.vector_store %arg3[%c0_9, %c0_10, %c0_11], %25 {strides = array<i32>} : memref<1x8x256xf32, #tpu.memory_space<vmem>>, vector<1x8x256xf32>,
    %c0_12 = arith.constant 0 : index
    %c0_13 = arith.constant 0 : index
    %c0_14 = arith.constant 0 : index
    %26 = vector.load %arg4[%c0_12, %c0_13, %c0_14] : memref<1x8x256xf32, #tpu.memory_space<vmem>>, vector<1x8x256xf32>
    %27 = vector.shape_cast %26 : vector<1x8x256xf32> to vector<8x256xf32>
    %28 = arith.addf %27, %19 : vector<8x256xf32>
    %c0_15 = arith.constant 0 : index
    %c0_16 = arith.constant 0 : index
    %c0_17 = arith.constant 0 : index
    %29 = vector.load %arg4[%c0_15, %c0_16, %c0_17] : memref<1x8x256xf32, #tpu.memory_space<vmem>>, vector<1x8x256xf32>
    %30 = vector.shape_cast %29 : vector<1x8x256xf32> to vector<8x256xf32>
    %31 = vector.shape_cast %28 : vector<8x256xf32> to vector<1x8x256xf32>
    tpu.vector_store %arg4[%c0_15, %c0_16, %c0_17], %31 {strides = array<i32>} : memref<1x8x256xf32, #tpu.memory_space<vmem>>, vector<1x8x256xf32>,
    return
  }
  func.func @transform_0(%arg0: i32) -> (i32, i32) {
    %c0_i32 = arith.constant 0 : i32
    %c0_i32_0 = arith.constant 0 : i32
    return %arg0, %c0_i32 : i32, i32
  }
  func.func @transform_1(%arg0: i32) -> (i32, i32) {
    %c0_i32 = arith.constant 0 : i32
    %c0_i32_0 = arith.constant 0 : i32
    return %arg0, %c0_i32 : i32, i32
  }
  func.func @transform_2(%arg0: i32) -> (i32, i32, i32) {
    %c0_i32 = arith.constant 0 : i32
    %c0_i32_0 = arith.constant 0 : i32
    %c0_i32_1 = arith.constant 0 : i32
    %c0_i32_2 = arith.constant 0 : i32
    return %c0_i32, %c0_i32_0, %c0_i32_1 : i32, i32, i32
  }
  func.func @transform_3(%arg0: i32) -> (i32, i32, i32) {
    %c0_i32 = arith.constant 0 : i32
    %c0_i32_0 = arith.constant 0 : i32
    %c0_i32_1 = arith.constant 0 : i32
    %c0_i32_2 = arith.constant 0 : i32
    return %c0_i32, %c0_i32_0, %c0_i32_1 : i32, i32, i32
  }
}

</mosaic_0001>

<llo_original>
// kernel: tpu_custom_call.1
$region0: #{tpu_custom_call.1}
  #allocation0 [shape = 'u32[]', space=smem, size = 0x4, offset = 0x4, fixed_abs, tag = 'smem constant byte address 0x4 - core index']
  #allocation1 [shape = 'u32[144,128]{1,0:T(1,128)}', space=vmem, size = 0x12000, scoped, tag = 'internal scratch']
  %s0 = inlined_call_operand.hbm [shape: f32[18,256], index: 0, kind: input, shape index: {}]
  %s1 = inlined_call_operand.hbm [shape: f32[18,256], index: 1, kind: input, shape index: {}]
  %s2 = inlined_call_operand.hbm [shape: f32[1,8,256], index: 2, kind: output, shape index: {0}]
  %s3 = inlined_call_operand.hbm [shape: f32[1,8,256], index: 3, kind: output, shape index: {1}]
  %4 = xla_tuple %s2, %s3
  %s5 = sld [smem:[#allocation0]]
  $region38: #{tpu_custom_call.1} parent=0
    _
  %s7 = ssub.s32 1, %s5
  %s8 = scalar_select 0, %s7, %s5
  $region1: #{tpu_custom_call.1} parent=0
    #allocation2 [shape = 'u8[16384]{0}', space=vmem, size = 0x4000, scoped, tag = 'input window, operand 0, single buffered']
    #allocation3 [shape = 's32[1]{0}', space=sflag, size = 0x4, scoped, tag = 'scoped memory for tpu_custom_call.1']
    #allocation4 [shape = 's32[1]{0}', space=sflag, size = 0x4, scoped, tag = 'scoped memory for tpu_custom_call.1']
    #allocation5 [shape = 'u8[16384]{0}', space=vmem, size = 0x4000, scoped, tag = 'input window, operand 1, single buffered']
    #allocation6 [shape = 's32[1]{0}', space=sflag, size = 0x4, scoped, tag = 'scoped memory for tpu_custom_call.1']
    #allocation7 [shape = 'u8[8192]{0}', space=vmem, size = 0x2000, scoped, tag = 'output window, operand 0, single buffered']
    #allocation8 [shape = 'u8[8192]{0}', space=vmem, size = 0x2000, scoped, tag = 'output window, operand 1, single buffered']
    #allocation9 [shape = 's32[1]{0}', space=sflag, size = 0x4, scoped, tag = 'scoped memory for tpu_custom_call.1']
    %9 = vsyncpa [#allocation3], 0
    %10 = vsyncpa [#allocation6], 0
    %11 = vsyncpa [#allocation4], 0
    %12 = vsyncpa [#allocation9], 0
    // Predicated region
    $region2: #{tpu_custom_call.1} parent=1 // pred_check
      _
    $region3: #{tpu_custom_call.1} parent=1 // pred_check_branch
      %14 = sbr.rel (0) target = $region5
    $region4: #{tpu_custom_call.1} parent=1 // pred_region
      %s16 = ssub.s32 512, 512
      %17 = vsyncadd [#allocation3], %s16
      %s18 = sshll.u32 [#allocation2], 4
      %s19 = int_to_ptr.vmem [resolvable:$true] %s18
      %24 = dma.hbm_to_vmem [thread:$0]  %s0, 512, %s19, [#allocation3], 256, 256, 16
    $region5: #{tpu_custom_call.1} parent=1 // pred_fallthru
      _
    // Predicated region
    $region6: #{tpu_custom_call.1} parent=1 // pred_check
      _
    $region7: #{tpu_custom_call.1} parent=1 // pred_check_branch
      %26 = sbr.rel (0) target = $region9
    $region8: #{tpu_custom_call.1} parent=1 // pred_region
      %s28 = ssub.s32 512, 512
      %29 = vsyncadd [#allocation6], %s28
      %s30 = sshll.u32 [#allocation5], 4
      %s31 = int_to_ptr.vmem [resolvable:$true] %s30
      %36 = dma.hbm_to_vmem [thread:$0]  %s1, 512, %s31, [#allocation6], 256, 256, 16
    $region9: #{tpu_custom_call.1} parent=1 // pred_fallthru
      _
    // Predicated region
    $region10: #{tpu_custom_call.1} parent=1 // pred_check
      _
    $region11: #{tpu_custom_call.1} parent=1 // pred_check_branch
      %38 = sbr.rel (0) target = $region13
    $region12: #{tpu_custom_call.1} parent=1 // pred_region
      %39 = dma.done [#allocation3], 512
    $region13: #{tpu_custom_call.1} parent=1 // pred_fallthru
      _
    // Predicated region
    $region14: #{tpu_custom_call.1} parent=1 // pred_check
      _
    $region15: #{tpu_custom_call.1} parent=1 // pred_check_branch
      %41 = sbr.rel (0) target = $region17
    $region16: #{tpu_custom_call.1} parent=1 // pred_region
      %42 = dma.done [#allocation6], 512
    $region17: #{tpu_custom_call.1} parent=1 // pred_fallthru
      _
    %p43 = scmp.eq.s32.totalorder 0, 0
    // Predicated region
    $region18: #{tpu_custom_call.1} parent=1 // pred_check
      %p44 = pneg %p43
    $region19: #{tpu_custom_call.1} parent=1 // pred_check_branch
      %46 = sbr.rel (%p44) target = $region21
    $region20: #{tpu_custom_call.1} parent=1 // pred_region
      %47 = vst [vmem:[#allocation7] sm:$0xff] 0.0
      %48 = vst [vmem:[#allocation7 + $0x8] sm:$0xff] 0.0
      %49 = vst [vmem:[#allocation8] sm:$0xff] 0.0
      %50 = vst [vmem:[#allocation8 + $0x8] sm:$0xff] 0.0
    $region21: #{tpu_custom_call.1} parent=1 // pred_fallthru
      _
    %s51 = smul.u32 0, 2
    %s52 = smul.addr %s51, 8
    %s53 = scalar_lea.vmem [#allocation2], %s52
    %v54 = vld [vmem:[%s53] sm:$0xff]
    %v55 = vld [vmem:[%s53 + $0x8] sm:$0xff]
    %v56 = vadd.f32 %v54, 0.0
    %v57 = vadd.f32 %v55, 0.0
    %s58 = smul.addr %s51, 8
    %s59 = scalar_lea.vmem [#allocation5], %s58
    %v60 = vld [vmem:[%s59] sm:$0xff]
    %v61 = vld [vmem:[%s59 + $0x8] sm:$0xff]
    %v62 = vadd.f32 %v60, 0.0
    %v63 = vadd.f32 %v61, 0.0
    %s64 = smul.u32 1, 2
    %s65 = smul.addr %s64, 8
    %s66 = scalar_lea.vmem [#allocation2], %s65
    %v67 = vld [vmem:[%s66] sm:$0xff]
    %v68 = vld [vmem:[%s66 + $0x8] sm:$0xff]
    %v69 = vadd.f32 %v56, %v67
    %v70 = vadd.f32 %v57, %v68
    %s71 = smul.addr %s64, 8
    %s72 = scalar_lea.vmem [#allocation5], %s71
    %v73 = vld [vmem:[%s72] sm:$0xff]
    %v74 = vld [vmem:[%s72 + $0x8] sm:$0xff]
    %v75 = vadd.f32 %v62, %v73
    %v76 = vadd.f32 %v63, %v74
    %v77 = vld [vmem:[#allocation7] sm:$0xff]
    %v78 = vld [vmem:[#allocation7 + $0x8] sm:$0xff]
    %v79 = vadd.f32 %v77, %v69
    %v80 = vadd.f32 %v78, %v70
    %81 = vst [vmem:[#allocation7] sm:$0xff] %v79
    %82 = vst [vmem:[#allocation7 + $0x8] sm:$0xff] %v80
    %v83 = vld [vmem:[#allocation8] sm:$0xff]
    %v84 = vld [vmem:[#allocation8 + $0x8] sm:$0xff]
    %v85 = vadd.f32 %v83, %v75
    %v86 = vadd.f32 %v84, %v76
    %87 = vst [vmem:[#allocation8] sm:$0xff] %v85
    %88 = vst [vmem:[#allocation8 + $0x8] sm:$0xff] %v86
    // Predicated region
    $region22: #{tpu_custom_call.1} parent=1 // pred_check
      _
    $region23: #{tpu_custom_call.1} parent=1 // pred_check_branch
      %90 = sbr.rel (0) target = $region25
    $region24: #{tpu_custom_call.1} parent=1 // pred_region
      %s92 = ssub.s32 256, 256
      %93 = vsyncadd [#allocation4], %s92
      %s95 = sshll.u32 [#allocation7], 4
      %s96 = int_to_ptr.vmem [resolvable:$true] %s95
      %98 = dma.vmem_to_hbm [thread:$0]  %s96, 256, %s2, [#allocation4]
    $region25: #{tpu_custom_call.1} parent=1 // pred_fallthru
      _
    // Predicated region
    $region26: #{tpu_custom_call.1} parent=1 // pred_check
      _
    $region27: #{tpu_custom_call.1} parent=1 // pred_check_branch
      %100 = sbr.rel (0) target = $region29
    $region28: #{tpu_custom_call.1} parent=1 // pred_region
      %s102 = ssub.s32 256, 256
      %103 = vsyncadd [#allocation9], %s102
      %s105 = sshll.u32 [#allocation8], 4
      %s106 = int_to_ptr.vmem [resolvable:$true] %s105
      %108 = dma.vmem_to_hbm [thread:$0]  %s106, 256, %s3, [#allocation9]
    $region29: #{tpu_custom_call.1} parent=1 // pred_fallthru
      _
    // Predicated region
    $region30: #{tpu_custom_call.1} parent=1 // pred_check
      _
    $region31: #{tpu_custom_call.1} parent=1 // pred_check_branch
      %110 = sbr.rel (0) target = $region33
    $region32: #{tpu_custom_call.1} parent=1 // pred_region
      %111 = dma.done [#allocation4], 256
    $region33: #{tpu_custom_call.1} parent=1 // pred_fallthru
      _
    // Predicated region
    $region34: #{tpu_custom_call.1} parent=1 // pred_check
      _
    $region35: #{tpu_custom_call.1} parent=1 // pred_check_branch
      %113 = sbr.rel (0) target = $region37
    $region36: #{tpu_custom_call.1} parent=1 // pred_region
      %114 = dma.done [#allocation9], 256
    $region37: #{tpu_custom_call.1} parent=1 // pred_fallthru
      _
    %115 = vsyncpa [#allocation3], 1
    %116 = vsyncpa [#allocation6], 1
    %117 = vsyncpa [#allocation4], 1
    %118 = vsyncpa [#allocation9], 1

</llo_original>
